<compile_context>
chip_gen: v7x
topology: tpu7x:2x2x1
jax: 0.10.0
libtpu: 0.0.40
codegen_flags: <defaults>
</compile_context>

<pallas_src>
import functools

import jax
import jax.numpy as jnp
from jax.experimental import pallas as pl
from jax.experimental.pallas import tpu as pltpu

LANE = 128
SUBLANE_BF16 = 16  # bf16 packs two rows per sublane


def _round_up(n, m):
    return ((n + m - 1) // m) * m


def mlp_kernel(x_ref, w1_ref, b1_ref, w2_ref, b2_ref, w3_ref, b3_ref, o_ref):
    # In-kernel bf16 cast of the activation tile (rides the VPU slot, which has slack;
    # avoids a separate wrapper-side HBM cast pass on a bandwidth-bound kernel).
    x = x_ref[...].astype(w1_ref.dtype)

    # linear_1 + ReLU (bf16 MXU feed, f32 accumulate, f32 bias/ReLU)
    h1 = jnp.dot(x, w1_ref[...], preferred_element_type=jnp.float32)
    h1 = jnp.maximum(h1 + b1_ref[...], 0.0)

    # linear_2 + ReLU
    h2 = jnp.dot(h1.astype(w2_ref.dtype), w2_ref[...],
                 preferred_element_type=jnp.float32)
    h2 = jnp.maximum(h2 + b2_ref[...], 0.0)

    # linear_3 (output lanes zero-padded to 128); bf16 store halves HBM writeback.
    out = jnp.dot(h2.astype(w3_ref.dtype), w3_ref[...],
                  preferred_element_type=jnp.float32)
    o_ref[...] = (out + b3_ref[...]).astype(o_ref.dtype)


def prepare_params(params, compute_dtype=jnp.bfloat16):
    """One-time prep: transpose to (in,out), zero-pad narrow dims to lane width (128),
    cast weights to `compute_dtype`. Biases stay f32 (bias add / ReLU run in f32).
    Zero padding is mathematically inert through ReLU and the final matmul."""
    w1, b1 = params["w1"], params["b1"]
    w2, b2 = params["w2"], params["b2"]
    w3, b3 = params["w3"], params["b3"]

    h1_dim = w1.shape[0]
    h2_dim = w2.shape[0]
    out_dim = w3.shape[0]
    h2_pad = _round_up(h2_dim, LANE)
    out_pad = _round_up(out_dim, LANE)

    w1t = w1.T.astype(compute_dtype)                                   # (in, 256)
    w2t = jnp.zeros((h1_dim, h2_pad), compute_dtype)
    w2t = w2t.at[:, :h2_dim].set(w2.T.astype(compute_dtype))           # (256, 128)
    w3t = jnp.zeros((h2_pad, out_pad), compute_dtype)
    w3t = w3t.at[:h2_dim, :out_dim].set(w3.T.astype(compute_dtype))    # (128, 128)

    b1p = b1.astype(jnp.float32)[None, :]                              # (1, 256)
    b2p = jnp.zeros((1, h2_pad), jnp.float32).at[0, :h2_dim].set(b2)   # (1, 128)
    b3p = jnp.zeros((1, out_pad), jnp.float32).at[0, :out_dim].set(b3) # (1, 128)

    return {"w1t": w1t, "b1": b1p, "w2t": w2t, "b2": b2p, "w3t": w3t, "b3": b3p}


@functools.partial(jax.jit, static_argnames=("out_dim", "tile_b"))
def deep_nn_forward(x, prepared, out_dim, tile_b=1024):
    """x: [B, input_dim] f32. prepared: output of prepare_params. Returns [B, out_dim] f32."""
    B, in_dim = x.shape
    w1t, b1 = prepared["w1t"], prepared["b1"]
    w2t, b2 = prepared["w2t"], prepared["b2"]
    w3t, b3 = prepared["w3t"], prepared["b3"]
    h1_dim = w1t.shape[1]
    h2_pad = w2t.shape[1]
    out_pad = w3t.shape[1]

    # Batch tile: multiple of 16 (bf16 sublane packing), capped so the grid has at
    # least 2 steps when feasible (so v7x's two TensorCores both run). Tiny B gets a
    # single full-array block (no padding, no overhang). No wrapper-side pad of x:
    # a ragged last tile relies on Pallas masked block writes.
    if B <= SUBLANE_BF16:
        tb = B
    else:
        tb = min(tile_b, _round_up(pl.cdiv(B, 2), SUBLANE_BF16))
    grid = (pl.cdiv(B, tb),)

    def resident(shape):
        return pl.BlockSpec(shape, lambda i: (0, 0))

    weight_bytes = sum(
        prepared[k].size * prepared[k].dtype.itemsize
        for k in ("w1t", "w2t", "w3t", "b1", "b2", "b3")
    )
    flops = 2 * grid[0] * tb * (in_dim * h1_dim + h1_dim * h2_pad + h2_pad * out_pad)
    bytes_accessed = (
        x.size * x.dtype.itemsize + weight_bytes + B * out_pad * 2
    )

    # Right-size the VMEM budget: double-buffered x/out tiles + resident weights + margin.
    x_tile_bytes = tb * in_dim * 4
    out_tile_bytes = tb * out_pad * 2
    vmem_limit = int(min(
        64 << 20,
        max(16 << 20,
            2 * (x_tile_bytes + out_tile_bytes) + 2 * weight_bytes + (8 << 20)),
    ))

    out_padded = pl.pallas_call(
        mlp_kernel,
        out_shape=jax.ShapeDtypeStruct((B, out_pad), jnp.bfloat16),
        grid=grid,
        in_specs=[
            pl.BlockSpec((tb, in_dim), lambda i: (i, 0)),   # x tile: pipelined over batch
            resident(w1t.shape), resident(b1.shape),        # weights/biases resident
            resident(w2t.shape), resident(b2.shape),
            resident(w3t.shape), resident(b3.shape),
        ],
        out_specs=pl.BlockSpec((tb, out_pad), lambda i: (i, 0)),
        compiler_params=pltpu.CompilerParams(
            dimension_semantics=("parallel",),
            vmem_limit_bytes=vmem_limit,
        ),
        cost_estimate=pl.CostEstimate(
            flops=flops, transcendentals=0, bytes_accessed=bytes_accessed
        ),
    )(x, w1t, b1, w2t, b2, w3t, b3)

    # Tiny strided read of the 2 valid columns; upcast to the module's f32 output.
    return out_padded[:, :out_dim].astype(jnp.float32)


def init_params(key, input_dim=768, output_dim=2):
    """Deterministic PyTorch-nn.Linear-style init: U(-1/sqrt(fan_in), 1/sqrt(fan_in))."""
    ks = jax.random.split(key, 6)

    def linear(kw, kb, fan_in, fan_out):
        bound = 1.0 / jnp.sqrt(fan_in)
        w = jax.random.uniform(kw, (fan_out, fan_in), jnp.float32, -bound, bound)
        b = jax.random.uniform(kb, (fan_out,), jnp.float32, -bound, bound)
        return w, b

    w1, b1 = linear(ks[0], ks[1], input_dim, 256)
    w2, b2 = linear(ks[2], ks[3], 256, 64)
    w3, b3 = linear(ks[4], ks[5], 64, output_dim)
    return {"w1": w1, "b1": b1, "w2": w2, "b2": b2, "w3": w3, "b3": b3}


def reference_forward_f32(x, p):
    """Pure-f32 PyTorch semantics."""
    h1 = jnp.maximum(x @ p["w1"].T + p["b1"], 0.0)
    h2 = jnp.maximum(h1 @ p["w2"].T + p["b2"], 0.0)
    return h2 @ p["w3"].T + p["b3"]


def reference_forward_quantized(x, prepared, out_dim):
    """Reference mirroring the kernel's numerics (bf16 feeds, f32 accumulation, bf16 store)."""
    cd = prepared["w1t"].dtype
    w1 = prepared["w1t"].astype(jnp.float32)
    w2 = prepared["w2t"].astype(jnp.float32)
    w3 = prepared["w3t"].astype(jnp.float32)
    xf = x.astype(cd).astype(jnp.float32)
    h1 = jnp.maximum(xf @ w1 + prepared["b1"], 0.0)
    h2 = jnp.maximum(h1.astype(cd).astype(jnp.float32) @ w2 + prepared["b2"], 0.0)
    out = h2.astype(cd).astype(jnp.float32) @ w3 + prepared["b3"]
    out = out.astype(cd).astype(jnp.float32)   # kernel stores the output block in bf16
    return out[:, :out_dim]


if __name__ == "__main__":
    key = jax.random.PRNGKey(0)
    k_x, k_p = jax.random.split(key)

    B, INPUT_DIM, OUTPUT_DIM = 2, 768, 2
    x = jax.random.normal(k_x, (B, INPUT_DIM), jnp.float32)
    params = init_params(k_p, INPUT_DIM, OUTPUT_DIM)
    prepared = prepare_params(params)  # one-time transpose / pad / bf16 cast

    out = deep_nn_forward(x, prepared, OUTPUT_DIM)
    out = jax.block_until_ready(out)
    assert out.shape == (B, OUTPUT_DIM)

    # Exact-semantics check (same bf16 quantization as the kernel, incl. bf16 output store).
    ref_q = reference_forward_quantized(x, prepared, OUTPUT_DIM)
    assert jnp.allclose(out, ref_q, atol=1e-2, rtol=1e-2), "mismatch vs quantized reference"

    # Loose check against the pure-f32 PyTorch-semantics reference.
    ref_f32 = reference_forward_f32(x, params)
    assert jnp.allclose(out, ref_f32, atol=5e-2, rtol=5e-2), "mismatch vs f32 reference"

    print("KERNEL_OK")
</pallas_src>

<mosaic_0001>
module attributes {stable_mosaic.version = 11 : i64} {
  func.func @mlp_kernel(%arg0: i32, %arg1: memref<2x768xf32, #tpu.memory_space<vmem>>, %arg2: memref<768x256xbf16, #tpu.memory_space<vmem>>, %arg3: memref<1x256xf32, #tpu.memory_space<vmem>>, %arg4: memref<256x128xbf16, #tpu.memory_space<vmem>>, %arg5: memref<1x128xf32, #tpu.memory_space<vmem>>, %arg6: memref<128x128xbf16, #tpu.memory_space<vmem>>, %arg7: memref<1x128xf32, #tpu.memory_space<vmem>>, %arg8: memref<2x128xbf16, #tpu.memory_space<vmem>>) attributes {dimension_semantics = [#tpu.dimension_semantics<parallel>], iteration_bounds = array<i64: 1>, scalar_prefetch = 0 : i64, scratch_operands = 0 : i64, tpu.core_type = #tpu.core_type<tc>, window_params = [{transform_indices = @transform_0, window_bounds = array<i64: 2, 768>}, {pipeline_mode = #tpu.pipeline_mode<synchronous>, transform_indices = @transform_1, window_bounds = array<i64: 768, 256>}, {pipeline_mode = #tpu.pipeline_mode<synchronous>, transform_indices = @transform_2, window_bounds = array<i64: 1, 256>}, {pipeline_mode = #tpu.pipeline_mode<synchronous>, transform_indices = @transform_3, window_bounds = array<i64: 256, 128>}, {pipeline_mode = #tpu.pipeline_mode<synchronous>, transform_indices = @transform_4, window_bounds = array<i64: 1, 128>}, {pipeline_mode = #tpu.pipeline_mode<synchronous>, transform_indices = @transform_5, window_bounds = array<i64: 128, 128>}, {pipeline_mode = #tpu.pipeline_mode<synchronous>, transform_indices = @transform_6, window_bounds = array<i64: 1, 128>}, {transform_indices = @transform_7, window_bounds = array<i64: 2, 128>}]} {
    %c0 = arith.constant 0 : index
    %c0_0 = arith.constant 0 : index
    %0 = vector.load %arg1[%c0, %c0_0] : memref<2x768xf32, #tpu.memory_space<vmem>>, vector<2x768xf32>
    %1 = arith.truncf %0 : vector<2x768xf32> to vector<2x768xbf16>
    %c0_1 = arith.constant 0 : index
    %c0_2 = arith.constant 0 : index
    %2 = vector.load %arg2[%c0_1, %c0_2] : memref<768x256xbf16, #tpu.memory_space<vmem>>, vector<768x256xbf16>
    %cst = arith.constant dense<0.000000e+00> : vector<2x256xf32>
    %3 = tpu.matmul %1, %2, %cst {dimension_numbers = #tpu.dot_dimension_numbers<[1], [0], [0], [1], [0, 0, 1, 1], [], []>} : vector<2x768xbf16>, vector<768x256xbf16>, vector<2x256xf32> -> vector<2x256xf32>
    %c0_3 = arith.constant 0 : index
    %c0_4 = arith.constant 0 : index
    %4 = vector.load %arg3[%c0_3, %c0_4] : memref<1x256xf32, #tpu.memory_space<vmem>>, vector<1x256xf32>
    %5 = vector.broadcast %4 : vector<1x256xf32> to vector<2x256xf32>
    %6 = arith.addf %3, %5 : vector<2x256xf32>
    %cst_5 = arith.constant 0.000000e+00 : f32
    %7 = vector.broadcast %cst_5 : f32 to vector<2x256xf32>
    %8 = arith.maximumf %6, %7 : vector<2x256xf32>
    %9 = arith.truncf %8 : vector<2x256xf32> to vector<2x256xbf16>
    %c0_6 = arith.constant 0 : index
    %c0_7 = arith.constant 0 : index
    %10 = vector.load %arg4[%c0_6, %c0_7] : memref<256x128xbf16, #tpu.memory_space<vmem>>, vector<256x128xbf16>
    %cst_8 = arith.constant dense<0.000000e+00> : vector<2x128xf32>
    %11 = tpu.matmul %9, %10, %cst_8 {dimension_numbers = #tpu.dot_dimension_numbers<[1], [0], [0], [1], [0, 0, 1, 1], [], []>} : vector<2x256xbf16>, vector<256x128xbf16>, vector<2x128xf32> -> vector<2x128xf32>
    %c0_9 = arith.constant 0 : index
    %c0_10 = arith.constant 0 : index
    %12 = vector.load %arg5[%c0_9, %c0_10] : memref<1x128xf32, #tpu.memory_space<vmem>>, vector<1x128xf32>
    %13 = vector.broadcast %12 : vector<1x128xf32> to vector<2x128xf32>
    %14 = arith.addf %11, %13 : vector<2x128xf32>
    %cst_11 = arith.constant 0.000000e+00 : f32
    %15 = vector.broadcast %cst_11 : f32 to vector<2x128xf32>
    %16 = arith.maximumf %14, %15 : vector<2x128xf32>
    %17 = arith.truncf %16 : vector<2x128xf32> to vector<2x128xbf16>
    %c0_12 = arith.constant 0 : index
    %c0_13 = arith.constant 0 : index
    %18 = vector.load %arg6[%c0_12, %c0_13] : memref<128x128xbf16, #tpu.memory_space<vmem>>, vector<128x128xbf16>
    %cst_14 = arith.constant dense<0.000000e+00> : vector<2x128xf32>
    %19 = tpu.matmul %17, %18, %cst_14 {dimension_numbers = #tpu.dot_dimension_numbers<[1], [0], [0], [1], [0, 0, 1, 1], [], []>} : vector<2x128xbf16>, vector<128x128xbf16>, vector<2x128xf32> -> vector<2x128xf32>
    %c0_15 = arith.constant 0 : index
    %c0_16 = arith.constant 0 : index
    %20 = vector.load %arg7[%c0_15, %c0_16] : memref<1x128xf32, #tpu.memory_space<vmem>>, vector<1x128xf32>
    %21 = vector.broadcast %20 : vector<1x128xf32> to vector<2x128xf32>
    %22 = arith.addf %19, %21 : vector<2x128xf32>
    %23 = arith.truncf %22 : vector<2x128xf32> to vector<2x128xbf16>
    %c0_17 = arith.constant 0 : index
    %c0_18 = arith.constant 0 : index
    %24 = vector.load %arg8[%c0_17, %c0_18] : memref<2x128xbf16, #tpu.memory_space<vmem>>, vector<2x128xbf16>
    tpu.vector_store %arg8[%c0_17, %c0_18], %23 {strides = array<i32>} : memref<2x128xbf16, #tpu.memory_space<vmem>>, vector<2x128xbf16>,
    return
  }
  func.func @transform_0(%arg0: i32) -> (i32, i32) {
    %c0_i32 = arith.constant 0 : i32
    %c0_i32_0 = arith.constant 0 : i32
    return %arg0, %c0_i32 : i32, i32
  }
  func.func @transform_1(%arg0: i32) -> (i32, i32) {
    %c0_i32 = arith.constant 0 : i32
    %c0_i32_0 = arith.constant 0 : i32
    %c0_i32_1 = arith.constant 0 : i32
    return %c0_i32, %c0_i32_0 : i32, i32
  }
  func.func @transform_2(%arg0: i32) -> (i32, i32) {
    %c0_i32 = arith.constant 0 : i32
    %c0_i32_0 = arith.constant 0 : i32
    %c0_i32_1 = arith.constant 0 : i32
    return %c0_i32, %c0_i32_0 : i32, i32
  }
  func.func @transform_3(%arg0: i32) -> (i32, i32) {
    %c0_i32 = arith.constant 0 : i32
    %c0_i32_0 = arith.constant 0 : i32
    %c0_i32_1 = arith.constant 0 : i32
    return %c0_i32, %c0_i32_0 : i32, i32
  }
  func.func @transform_4(%arg0: i32) -> (i32, i32) {
    %c0_i32 = arith.constant 0 : i32
    %c0_i32_0 = arith.constant 0 : i32
    %c0_i32_1 = arith.constant 0 : i32
    return %c0_i32, %c0_i32_0 : i32, i32
  }
  func.func @transform_5(%arg0: i32) -> (i32, i32) {
    %c0_i32 = arith.constant 0 : i32
    %c0_i32_0 = arith.constant 0 : i32
    %c0_i32_1 = arith.constant 0 : i32
    return %c0_i32, %c0_i32_0 : i32, i32
  }
  func.func @transform_6(%arg0: i32) -> (i32, i32) {
    %c0_i32 = arith.constant 0 : i32
    %c0_i32_0 = arith.constant 0 : i32
    %c0_i32_1 = arith.constant 0 : i32
    return %c0_i32, %c0_i32_0 : i32, i32
  }
  func.func @transform_7(%arg0: i32) -> (i32, i32) {
    %c0_i32 = arith.constant 0 : i32
    %c0_i32_0 = arith.constant 0 : i32
    return %arg0, %c0_i32 : i32, i32
  }
}

</mosaic_0001>

<llo_original>
// kernel: deep_nn_forward.1
$region0: #{deep_nn_forward.1}
  #allocation0 [shape = 'u32[]', space=smem, size = 0x4, offset = 0x4, fixed_abs, tag = 'smem constant byte address 0x4 - core index']
  #allocation1 [shape = 'u32[144,128]{1,0:T(1,128)}', space=vmem, size = 0x12000, scoped, tag = 'internal scratch']
  %s0 = inlined_call_operand.hbm [shape: f32[2,768], index: 0, kind: input, shape index: {}]
  %s1 = inlined_call_operand.hbm [shape: bf16[768,256], index: 1, kind: input, shape index: {}]
  %s2 = inlined_call_operand.vmem [shape: f32[1,256], index: 2, kind: input, shape index: {}]
  %s3 = inlined_call_operand.hbm [shape: bf16[256,128], index: 3, kind: input, shape index: {}]
  %s4 = inlined_call_operand.vmem [shape: f32[1,128], index: 4, kind: input, shape index: {}]
  %s5 = inlined_call_operand.hbm [shape: bf16[128,128], index: 5, kind: input, shape index: {}]
  %s6 = inlined_call_operand.vmem [shape: f32[1,128], index: 6, kind: input, shape index: {}]
  %s7 = inlined_call_operand.vmem [shape: bf16[2,128], index: 7, kind: output, shape index: {}]
  %s8 = sld [smem:[#allocation0]]
  $region54: #{deep_nn_forward.1} parent=0
    _
  %s10 = ssub.s32 1, %s8
  %s11 = scalar_select 0, %s10, %s8
  $region1: #{deep_nn_forward.1} parent=0
    #allocation2 [shape = 'u8[6144]{0}', space=vmem, size = 0x1800, scoped, tag = 'input window, operand 0, single buffered']
    #allocation3 [shape = 's32[1]{0}', space=sflag, size = 0x4, scoped, tag = 'scoped memory for deep_nn_forward.1']
    #allocation4 [shape = 'u8[393216]{0}', space=vmem, size = 0x60000, scoped, tag = 'input window, operand 1, single buffered']
    #allocation5 [shape = 's32[1]{0}', space=sflag, size = 0x4, scoped, tag = 'scoped memory for deep_nn_forward.1']
    #allocation6 [shape = 'u8[65536]{0}', space=vmem, size = 0x10000, scoped, tag = 'input window, operand 3, single buffered']
    #allocation7 [shape = 'u8[32768]{0}', space=vmem, size = 0x8000, scoped, tag = 'input window, operand 5, single buffered']
    #allocation8 [shape = 's32[1]{0}', space=sflag, size = 0x4, scoped, tag = 'scoped memory for deep_nn_forward.1']
    %12 = vsyncpa [#allocation3], 0
    %13 = vsyncpa [#allocation5], 0
    %14 = vsyncpa [#allocation8], 0
    // Predicated region
    $region2: #{deep_nn_forward.1} parent=1 // pred_check
      _
    $region3: #{deep_nn_forward.1} parent=1 // pred_check_branch
      %16 = sbr.rel (0) target = $region5
    $region4: #{deep_nn_forward.1} parent=1 // pred_region
      %s18 = ssub.s32 192, 192
      %19 = vsyncadd [#allocation3], %s18
      %s21 = sshll.u32 [#allocation2], 4
      %s22 = int_to_ptr.vmem [resolvable:$true] %s21
      %24 = dma.hbm_to_vmem [thread:$0]  %s0, 192, %s22, [#allocation3]
    $region5: #{deep_nn_forward.1} parent=1 // pred_fallthru
      _
    // Predicated region
    $region6: #{deep_nn_forward.1} parent=1 // pred_check
      _
    $region7: #{deep_nn_forward.1} parent=1 // pred_check_branch
      %26 = sbr.rel (0) target = $region9
    $region8: #{deep_nn_forward.1} parent=1 // pred_region
      %s28 = ssub.s32 12288, 12288
      %29 = vsyncadd [#allocation5], %s28
      %s30 = sshll.u32 [#allocation4], 4
      %s31 = int_to_ptr.vmem [resolvable:$true] %s30
      %36 = dma.hbm_to_vmem [thread:$0]  %s1, 12288, %s31, [#allocation5], 128, 128, 8
    $region9: #{deep_nn_forward.1} parent=1 // pred_fallthru
      _
    // Predicated region
    $region10: #{deep_nn_forward.1} parent=1 // pred_check
      _
    $region11: #{deep_nn_forward.1} parent=1 // pred_check_branch
      %38 = sbr.rel (0) target = $region13
    $region12: #{deep_nn_forward.1} parent=1 // pred_region
      _
    $region13: #{deep_nn_forward.1} parent=1 // pred_fallthru
      _
    // Predicated region
    $region14: #{deep_nn_forward.1} parent=1 // pred_check
      _
    $region15: #{deep_nn_forward.1} parent=1 // pred_check_branch
      %40 = sbr.rel (0) target = $region17
    $region16: #{deep_nn_forward.1} parent=1 // pred_region
      %s42 = ssub.s32 2048, 2048
      %43 = vsyncadd [#allocation5], %s42
      %s44 = sshll.u32 [#allocation6], 4
      %s45 = int_to_ptr.vmem [resolvable:$true] %s44
      %50 = dma.hbm_to_vmem [thread:$0]  %s3, 2048, %s45, [#allocation5], 64, 64, 4
    $region17: #{deep_nn_forward.1} parent=1 // pred_fallthru
      _
    // Predicated region
    $region18: #{deep_nn_forward.1} parent=1 // pred_check
      _
    $region19: #{deep_nn_forward.1} parent=1 // pred_check_branch
      %52 = sbr.rel (0) target = $region21
    $region20: #{deep_nn_forward.1} parent=1 // pred_region
      _
    $region21: #{deep_nn_forward.1} parent=1 // pred_fallthru
      _
    // Predicated region
    $region22: #{deep_nn_forward.1} parent=1 // pred_check
      _
    $region23: #{deep_nn_forward.1} parent=1 // pred_check_branch
      %54 = sbr.rel (0) target = $region25
    $region24: #{deep_nn_forward.1} parent=1 // pred_region
      %s56 = ssub.s32 1024, 1024
      %57 = vsyncadd [#allocation8], %s56
      %s58 = sshll.u32 [#allocation7], 4
      %s59 = int_to_ptr.vmem [resolvable:$true] %s58
      %64 = dma.hbm_to_vmem [thread:$0]  %s5, 1024, %s59, [#allocation8], 64, 64, 4
    $region25: #{deep_nn_forward.1} parent=1 // pred_fallthru
      _
    // Predicated region
    $region26: #{deep_nn_forward.1} parent=1 // pred_check
      _
    $region27: #{deep_nn_forward.1} parent=1 // pred_check_branch
      %66 = sbr.rel (0) target = $region29
    $region28: #{deep_nn_forward.1} parent=1 // pred_region
      _
    $region29: #{deep_nn_forward.1} parent=1 // pred_fallthru
      _
    // Predicated region
    $region30: #{deep_nn_forward.1} parent=1 // pred_check
      _
    $region31: #{deep_nn_forward.1} parent=1 // pred_check_branch
      %68 = sbr.rel (0) target = $region33
    $region32: #{deep_nn_forward.1} parent=1 // pred_region
      %69 = dma.done [#allocation3], 192
    $region33: #{deep_nn_forward.1} parent=1 // pred_fallthru
      _
    // Predicated region
    $region34: #{deep_nn_forward.1} parent=1 // pred_check
      _
    $region35: #{deep_nn_forward.1} parent=1 // pred_check_branch
      %71 = sbr.rel (0) target = $region37
    $region36: #{deep_nn_forward.1} parent=1 // pred_region
      %72 = dma.done [#allocation5], 12288
    $region37: #{deep_nn_forward.1} parent=1 // pred_fallthru
      _
    // Predicated region
    $region38: #{deep_nn_forward.1} parent=1 // pred_check
      _
    $region39: #{deep_nn_forward.1} parent=1 // pred_check_branch
      %74 = sbr.rel (0) target = $region41
    $region40: #{deep_nn_forward.1} parent=1 // pred_region
      %75 = dma.done [#allocation5], 2048
    $region41: #{deep_nn_forward.1} parent=1 // pred_fallthru
      _
    // Predicated region
    $region42: #{deep_nn_forward.1} parent=1 // pred_check
      _
    $region43: #{deep_nn_forward.1} parent=1 // pred_check_branch
      %77 = sbr.rel (0) target = $region45
    $region44: #{deep_nn_forward.1} parent=1 // pred_region
      %78 = dma.done [#allocation8], 1024
    $region45: #{deep_nn_forward.1} parent=1 // pred_fallthru
      _
    %v80 = vld [vmem:[#allocation2] sm:$0xff]
    %v81 = vld [vmem:[#allocation2 + $0x8] sm:$0xf]
    %v84 = vcombine.high %v80, %v80
    %v86 = vunpack.c.l.s4 1983009808
    %v87 = vunpack.c.0.s8 %v86
    %v88 = vlaneseq
    %v89 = vshrl.u32 %v88, 7
    %v90 = vsub.s32 %v87, %v89
    %v91 = vrot.slane %v80, %v90
    %v93 = vunpack.c.l.s4 1983009808
    %v94 = vunpack.c.0.s8 %v93
    %v95 = vlaneseq
    %v96 = vshrl.u32 %v95, 7
    %v97 = vsub.s32 %v94, %v96
    %v98 = vrot.slane %v84, %v97
    %v99 = vcombine.high %v91, %v91
    %v100 = vcombine.high %v98, %v98
    %v102 = vunpack.c.l.s4 1983009808
    %v103 = vunpack.c.0.s8 %v102
    %v104 = vlaneseq
    %v105 = vshrl.u32 %v104, 7
    %v106 = vsub.s32 %v103, %v105
    %v107 = vrot.slane %v81, %v106
    %v108 = vcombine.high %v107, %v107
    %v115 = vpack.c.bf16 %v91, %v91
    %v116 = vpack.c.bf16 %v99, %v99
    %v117 = vpack.c.bf16 %v98, %v98
    %v118 = vpack.c.bf16 %v100, %v100
    %v119 = vpack.c.bf16 %v107, %v107
    %v120 = vpack.c.bf16 %v108, %v108
    %v121 = vld [vmem:[#allocation4] sm:$0xff]
    %v122 = vld [vmem:[#allocation4 + $0x8] sm:$0xff]
    %v123 = vld [vmem:[#allocation4 + $0x10] sm:$0xff]
    %v124 = vld [vmem:[#allocation4 + $0x18] sm:$0xff]
    %v125 = vld [vmem:[#allocation4 + $0x20] sm:$0xff]
    %v126 = vld [vmem:[#allocation4 + $0x28] sm:$0xff]
    %v127 = vld [vmem:[#allocation4 + $0x30] sm:$0xff]
    %v128 = vld [vmem:[#allocation4 + $0x38] sm:$0xff]
    %v129 = vld [vmem:[#allocation4 + $0x40] sm:$0xff]
    %v130 = vld [vmem:[#allocation4 + $0x48] sm:$0xff]
    %v131 = vld [vmem:[#allocation4 + $0x50] sm:$0xff]
    %v132 = vld [vmem:[#allocation4 + $0x58] sm:$0xff]
    %v133 = vld [vmem:[#allocation4 + $0x60] sm:$0xff]
    %v134 = vld [vmem:[#allocation4 + $0x68] sm:$0xff]
    %v135 = vld [vmem:[#allocation4 + $0x70] sm:$0xff]
    %v136 = vld [vmem:[#allocation4 + $0x78] sm:$0xff]
    %v137 = vld [vmem:[#allocation4 + $0x80] sm:$0xff]
    %v138 = vld [vmem:[#allocation4 + $0x88] sm:$0xff]
    %v139 = vld [vmem:[#allocation4 + $0x90] sm:$0xff]
    %v140 = vld [vmem:[#allocation4 + $0x98] sm:$0xff]
    %v141 = vld [vmem:[#allocation4 + $0xa0] sm:$0xff]
    %v142 = vld [vmem:[#allocation4 + $0xa8] sm:$0xff]
    %v143 = vld [vmem:[#allocation4 + $0xb0] sm:$0xff]
    %v144 = vld [vmem:[#allocation4 + $0xb8] sm:$0xff]
    %v145 = vld [vmem:[#allocation4 + $0xc0] sm:$0xff]
    %v146 = vld [vmem:[#allocation4 + $0xc8] sm:$0xff]
    %v147 = vld [vmem:[#allocation4 + $0xd0] sm:$0xff]
    %v148 = vld [vmem:[#allocation4 + $0xd8] sm:$0xff]
    %v149 = vld [vmem:[#allocation4 + $0xe0] sm:$0xff]
    %v150 = vld [vmem:[#allocation4 + $0xe8] sm:$0xff]
    %v151 = vld [vmem:[#allocation4 + $0xf0] sm:$0xff]
    %v152 = vld [vmem:[#allocation4 + $0xf8] sm:$0xff]
    %v153 = vld [vmem:[#allocation4 + $0x100] sm:$0xff]
    %v154 = vld [vmem:[#allocation4 + $0x108] sm:$0xff]
    %v155 = vld [vmem:[#allocation4 + $0x110] sm:$0xff]
    %v156 = vld [vmem:[#allocation4 + $0x118] sm:$0xff]
    %v157 = vld [vmem:[#allocation4 + $0x120] sm:$0xff]
    %v158 = vld [vmem:[#allocation4 + $0x128] sm:$0xff]
    %v159 = vld [vmem:[#allocation4 + $0x130] sm:$0xff]
    %v160 = vld [vmem:[#allocation4 + $0x138] sm:$0xff]
    %v161 = vld [vmem:[#allocation4 + $0x140] sm:$0xff]
    %v162 = vld [vmem:[#allocation4 + $0x148] sm:$0xff]
    %v163 = vld [vmem:[#allocation4 + $0x150] sm:$0xff]
    %v164 = vld [vmem:[#allocation4 + $0x158] sm:$0xff]
    %v165 = vld [vmem:[#allocation4 + $0x160] sm:$0xff]
    %v166 = vld [vmem:[#allocation4 + $0x168] sm:$0xff]
    %v167 = vld [vmem:[#allocation4 + $0x170] sm:$0xff]
    %v168 = vld [vmem:[#allocation4 + $0x178] sm:$0xff]
    %v169 = vld [vmem:[#allocation4 + $0x180] sm:$0xff]
    %v170 = vld [vmem:[#allocation4 + $0x188] sm:$0xff]
    %v171 = vld [vmem:[#allocation4 + $0x190] sm:$0xff]
    %v172 = vld [vmem:[#allocation4 + $0x198] sm:$0xff]
    %v173 = vld [vmem:[#allocation4 + $0x1a0] sm:$0xff]
    %v174 = vld [vmem:[#allocation4 + $0x1a8] sm:$0xff]
    %v175 = vld [vmem:[#allocation4 + $0x1b0] sm:$0xff]
    %v176 = vld [vmem:[#allocation4 + $0x1b8] sm:$0xff]
    %v177 = vld [vmem:[#allocation4 + $0x1c0] sm:$0xff]
    %v178 = vld [vmem:[#allocation4 + $0x1c8] sm:$0xff]
    %v179 = vld [vmem:[#allocation4 + $0x1d0] sm:$0xff]
    %v180 = vld [vmem:[#allocation4 + $0x1d8] sm:$0xff]
    %v181 = vld [vmem:[#allocation4 + $0x1e0] sm:$0xff]
    %v182 = vld [vmem:[#allocation4 + $0x1e8] sm:$0xff]
    %v183 = vld [vmem:[#allocation4 + $0x1f0] sm:$0xff]
    %v184 = vld [vmem:[#allocation4 + $0x1f8] sm:$0xff]
    %v185 = vld [vmem:[#allocation4 + $0x200] sm:$0xff]
    %v186 = vld [vmem:[#allocation4 + $0x208] sm:$0xff]
    %v187 = vld [vmem:[#allocation4 + $0x210] sm:$0xff]
    %v188 = vld [vmem:[#allocation4 + $0x218] sm:$0xff]
    %v189 = vld [vmem:[#allocation4 + $0x220] sm:$0xff]
    %v190 = vld [vmem:[#allocation4 + $0x228] sm:$0xff]
    %v191 = vld [vmem:[#allocation4 + $0x230] sm:$0xff]
    %v192 = vld [vmem:[#allocation4 + $0x238] sm:$0xff]
    %v193 = vld [vmem:[#allocation4 + $0x240] sm:$0xff]
    %v194 = vld [vmem:[#allocation4 + $0x248] sm:$0xff]
    %v195 = vld [vmem:[#allocation4 + $0x250] sm:$0xff]
    %v196 = vld [vmem:[#allocation4 + $0x258] sm:$0xff]
    %v197 = vld [vmem:[#allocation4 + $0x260] sm:$0xff]
    %v198 = vld [vmem:[#allocation4 + $0x268] sm:$0xff]
    %v199 = vld [vmem:[#allocation4 + $0x270] sm:$0xff]
    %v200 = vld [vmem:[#allocation4 + $0x278] sm:$0xff]
    %v201 = vld [vmem:[#allocation4 + $0x280] sm:$0xff]
    %v202 = vld [vmem:[#allocation4 + $0x288] sm:$0xff]
    %v203 = vld [vmem:[#allocation4 + $0x290] sm:$0xff]
    %v204 = vld [vmem:[#allocation4 + $0x298] sm:$0xff]
    %v205 = vld [vmem:[#allocation4 + $0x2a0] sm:$0xff]
    %v206 = vld [vmem:[#allocation4 + $0x2a8] sm:$0xff]
    %v207 = vld [vmem:[#allocation4 + $0x2b0] sm:$0xff]
    %v208 = vld [vmem:[#allocation4 + $0x2b8] sm:$0xff]
    %v209 = vld [vmem:[#allocation4 + $0x2c0] sm:$0xff]
    %v210 = vld [vmem:[#allocation4 + $0x2c8] sm:$0xff]
    %v211 = vld [vmem:[#allocation4 + $0x2d0] sm:$0xff]
    %v212 = vld [vmem:[#allocation4 + $0x2d8] sm:$0xff]
    %v213 = vld [vmem:[#allocation4 + $0x2e0] sm:$0xff]
    %v214 = vld [vmem:[#allocation4 + $0x2e8] sm:$0xff]
    %v215 = vld [vmem:[#allocation4 + $0x2f0] sm:$0xff]
    %v216 = vld [vmem:[#allocation4 + $0x2f8] sm:$0xff]
    %v217 = vld [vmem:[%s2] sm:$0x3]
    %v219 = vlaneseq
    %v220 = vshrl.u32 %v219, 7
    %v221 = vsub.s32 0, %v220
    %v222 = vrot.slane %v217, %v221
    %v223 = vlaneseq
    %v224 = vshrl.u32 %v223, 7
    %v225 = vsub.s32 1, %v224
    %v226 = vrot.slane %v217, %v225
    %v325 = vunpack.c.l.b16 %v121
    %v326 = vunpack.c.h.b16 %v121
    %v327 = vunpack.c.l.b16 %v122
    %v328 = vunpack.c.h.b16 %v122
    %v329 = vunpack.c.l.b16 %v123
    %v330 = vunpack.c.h.b16 %v123
    %v331 = vunpack.c.l.b16 %v124
    %v332 = vunpack.c.h.b16 %v124
    %v333 = vunpack.c.l.b16 %v125
    %v334 = vunpack.c.h.b16 %v125
    %v335 = vunpack.c.l.b16 %v126
    %v336 = vunpack.c.h.b16 %v126
    %v337 = vunpack.c.l.b16 %v127
    %v338 = vunpack.c.h.b16 %v127
    %v339 = vunpack.c.l.b16 %v128
    %v340 = vunpack.c.h.b16 %v128
    %v341 = vunpack.c.l.b16 %v129
    %v342 = vunpack.c.h.b16 %v129
    %v343 = vunpack.c.l.b16 %v130
    %v344 = vunpack.c.h.b16 %v130
    %v345 = vunpack.c.l.b16 %v131
    %v346 = vunpack.c.h.b16 %v131
    %v347 = vunpack.c.l.b16 %v132
    %v348 = vunpack.c.h.b16 %v132
    %v349 = vunpack.c.l.b16 %v133
    %v350 = vunpack.c.h.b16 %v133
    %v351 = vunpack.c.l.b16 %v134
    %v352 = vunpack.c.h.b16 %v134
    %v353 = vunpack.c.l.b16 %v135
    %v354 = vunpack.c.h.b16 %v135
    %v355 = vunpack.c.l.b16 %v136
    %v356 = vunpack.c.h.b16 %v136
    %v357 = vunpack.c.l.b16 %v137
    %v358 = vunpack.c.h.b16 %v137
    %v359 = vunpack.c.l.b16 %v138
    %v360 = vunpack.c.h.b16 %v138
    %v361 = vunpack.c.l.b16 %v139
    %v362 = vunpack.c.h.b16 %v139
    %v363 = vunpack.c.l.b16 %v140
    %v364 = vunpack.c.h.b16 %v140
    %v365 = vunpack.c.l.b16 %v141
    %v366 = vunpack.c.h.b16 %v141
    %v367 = vunpack.c.l.b16 %v142
    %v368 = vunpack.c.h.b16 %v142
    %v369 = vunpack.c.l.b16 %v143
    %v370 = vunpack.c.h.b16 %v143
    %v371 = vunpack.c.l.b16 %v144
    %v372 = vunpack.c.h.b16 %v144
    %v373 = vunpack.c.l.b16 %v145
    %v374 = vunpack.c.h.b16 %v145
    %v375 = vunpack.c.l.b16 %v146
    %v376 = vunpack.c.h.b16 %v146
    %v377 = vunpack.c.l.b16 %v147
    %v378 = vunpack.c.h.b16 %v147
    %v379 = vunpack.c.l.b16 %v148
    %v380 = vunpack.c.h.b16 %v148
    %v381 = vunpack.c.l.b16 %v149
    %v382 = vunpack.c.h.b16 %v149
    %v383 = vunpack.c.l.b16 %v150
    %v384 = vunpack.c.h.b16 %v150
    %v385 = vunpack.c.l.b16 %v151
    %v386 = vunpack.c.h.b16 %v151
    %v387 = vunpack.c.l.b16 %v152
    %v388 = vunpack.c.h.b16 %v152
    %v389 = vunpack.c.l.b16 %v153
    %v390 = vunpack.c.h.b16 %v153
    %v391 = vunpack.c.l.b16 %v154
    %v392 = vunpack.c.h.b16 %v154
    %v393 = vunpack.c.l.b16 %v155
    %v394 = vunpack.c.h.b16 %v155
    %v395 = vunpack.c.l.b16 %v156
    %v396 = vunpack.c.h.b16 %v156
    %v397 = vunpack.c.l.b16 %v157
    %v398 = vunpack.c.h.b16 %v157
    %v399 = vunpack.c.l.b16 %v158
    %v400 = vunpack.c.h.b16 %v158
    %v401 = vunpack.c.l.b16 %v159
    %v402 = vunpack.c.h.b16 %v159
    %v403 = vunpack.c.l.b16 %v160
    %v404 = vunpack.c.h.b16 %v160
    %v405 = vunpack.c.l.b16 %v161
    %v406 = vunpack.c.h.b16 %v161
    %v407 = vunpack.c.l.b16 %v162
    %v408 = vunpack.c.h.b16 %v162
    %v409 = vunpack.c.l.b16 %v163
    %v410 = vunpack.c.h.b16 %v163
    %v411 = vunpack.c.l.b16 %v164
    %v412 = vunpack.c.h.b16 %v164
    %v413 = vunpack.c.l.b16 %v165
    %v414 = vunpack.c.h.b16 %v165
    %v415 = vunpack.c.l.b16 %v166
    %v416 = vunpack.c.h.b16 %v166
    %v417 = vunpack.c.l.b16 %v167
    %v418 = vunpack.c.h.b16 %v167
    %v419 = vunpack.c.l.b16 %v168
    %v420 = vunpack.c.h.b16 %v168
    %v421 = vunpack.c.l.b16 %v169
    %v422 = vunpack.c.h.b16 %v169
    %v423 = vunpack.c.l.b16 %v170
    %v424 = vunpack.c.h.b16 %v170
    %v425 = vunpack.c.l.b16 %v171
    %v426 = vunpack.c.h.b16 %v171
    %v427 = vunpack.c.l.b16 %v172
    %v428 = vunpack.c.h.b16 %v172
    %v429 = vunpack.c.l.b16 %v173
    %v430 = vunpack.c.h.b16 %v173
    %v431 = vunpack.c.l.b16 %v174
    %v432 = vunpack.c.h.b16 %v174
    %v433 = vunpack.c.l.b16 %v175
    %v434 = vunpack.c.h.b16 %v175
    %v435 = vunpack.c.l.b16 %v176
    %v436 = vunpack.c.h.b16 %v176
    %v437 = vunpack.c.l.b16 %v177
    %v438 = vunpack.c.h.b16 %v177
    %v439 = vunpack.c.l.b16 %v178
    %v440 = vunpack.c.h.b16 %v178
    %v441 = vunpack.c.l.b16 %v179
    %v442 = vunpack.c.h.b16 %v179
    %v443 = vunpack.c.l.b16 %v180
    %v444 = vunpack.c.h.b16 %v180
    %v445 = vunpack.c.l.b16 %v181
    %v446 = vunpack.c.h.b16 %v181
    %v447 = vunpack.c.l.b16 %v182
    %v448 = vunpack.c.h.b16 %v182
    %v449 = vunpack.c.l.b16 %v183
    %v450 = vunpack.c.h.b16 %v183
    %v451 = vunpack.c.l.b16 %v184
    %v452 = vunpack.c.h.b16 %v184
    %v453 = vunpack.c.l.b16 %v185
    %v454 = vunpack.c.h.b16 %v185
    %v455 = vunpack.c.l.b16 %v186
    %v456 = vunpack.c.h.b16 %v186
    %v457 = vunpack.c.l.b16 %v187
    %v458 = vunpack.c.h.b16 %v187
    %v459 = vunpack.c.l.b16 %v188
    %v460 = vunpack.c.h.b16 %v188
    %v461 = vunpack.c.l.b16 %v189
    %v462 = vunpack.c.h.b16 %v189
    %v463 = vunpack.c.l.b16 %v190
    %v464 = vunpack.c.h.b16 %v190
    %v465 = vunpack.c.l.b16 %v191
    %v466 = vunpack.c.h.b16 %v191
    %v467 = vunpack.c.l.b16 %v192
    %v468 = vunpack.c.h.b16 %v192
    %v469 = vunpack.c.l.b16 %v193
    %v470 = vunpack.c.h.b16 %v193
    %v471 = vunpack.c.l.b16 %v194
    %v472 = vunpack.c.h.b16 %v194
    %v473 = vunpack.c.l.b16 %v195
    %v474 = vunpack.c.h.b16 %v195
    %v475 = vunpack.c.l.b16 %v196
    %v476 = vunpack.c.h.b16 %v196
    %v477 = vunpack.c.l.b16 %v197
    %v478 = vunpack.c.h.b16 %v197
    %v479 = vunpack.c.l.b16 %v198
    %v480 = vunpack.c.h.b16 %v198
    %v481 = vunpack.c.l.b16 %v199
    %v482 = vunpack.c.h.b16 %v199
    %v483 = vunpack.c.l.b16 %v200
    %v484 = vunpack.c.h.b16 %v200
    %v485 = vunpack.c.l.b16 %v201
    %v486 = vunpack.c.h.b16 %v201
    %v487 = vunpack.c.l.b16 %v202
    %v488 = vunpack.c.h.b16 %v202
    %v489 = vunpack.c.l.b16 %v203
    %v490 = vunpack.c.h.b16 %v203
    %v491 = vunpack.c.l.b16 %v204
    %v492 = vunpack.c.h.b16 %v204
    %v493 = vunpack.c.l.b16 %v205
    %v494 = vunpack.c.h.b16 %v205
    %v495 = vunpack.c.l.b16 %v206
    %v496 = vunpack.c.h.b16 %v206
    %v497 = vunpack.c.l.b16 %v207
    %v498 = vunpack.c.h.b16 %v207
    %v499 = vunpack.c.l.b16 %v208
    %v500 = vunpack.c.h.b16 %v208
    %v501 = vunpack.c.l.b16 %v209
    %v502 = vunpack.c.h.b16 %v209
    %v503 = vunpack.c.l.b16 %v210
    %v504 = vunpack.c.h.b16 %v210
    %v505 = vunpack.c.l.b16 %v211
    %v506 = vunpack.c.h.b16 %v211
    %v507 = vunpack.c.l.b16 %v212
    %v508 = vunpack.c.h.b16 %v212
    %v509 = vunpack.c.l.b16 %v213
    %v510 = vunpack.c.h.b16 %v213
    %v511 = vunpack.c.l.b16 %v214
    %v512 = vunpack.c.h.b16 %v214
    %v513 = vunpack.c.l.b16 %v215
    %v514 = vunpack.c.h.b16 %v215
    %v515 = vunpack.c.l.b16 %v216
    %v516 = vunpack.c.h.b16 %v216
    %v517 = vpack.c.b16 %v327, %v325
    %v518 = vpack.c.b16 %v328, %v326
    %v519 = vpack.c.b16 %v331, %v329
    %v520 = vpack.c.b16 %v332, %v330
    %v521 = vpack.c.b16 %v335, %v333
    %v522 = vpack.c.b16 %v336, %v334
    %v523 = vpack.c.b16 %v339, %v337
    %v524 = vpack.c.b16 %v340, %v338
    %v525 = vpack.c.b16 %v343, %v341
    %v526 = vpack.c.b16 %v344, %v342
    %v527 = vpack.c.b16 %v347, %v345
    %v528 = vpack.c.b16 %v348, %v346
    %v529 = vpack.c.b16 %v351, %v349
    %v530 = vpack.c.b16 %v352, %v350
    %v531 = vpack.c.b16 %v355, %v353
    %v532 = vpack.c.b16 %v356, %v354
    %v533 = vpack.c.b16 %v359, %v357
    %v534 = vpack.c.b16 %v360, %v358
    %v535 = vpack.c.b16 %v363, %v361
    %v536 = vpack.c.b16 %v364, %v362
    %v537 = vpack.c.b16 %v367, %v365
    %v538 = vpack.c.b16 %v368, %v366
    %v539 = vpack.c.b16 %v371, %v369
    %v540 = vpack.c.b16 %v372, %v370
    %v541 = vpack.c.b16 %v375, %v373
    %v542 = vpack.c.b16 %v376, %v374
    %v543 = vpack.c.b16 %v379, %v377
    %v544 = vpack.c.b16 %v380, %v378
    %v545 = vpack.c.b16 %v383, %v381
    %v546 = vpack.c.b16 %v384, %v382
    %v547 = vpack.c.b16 %v387, %v385
    %v548 = vpack.c.b16 %v388, %v386
    %v549 = vpack.c.b16 %v391, %v389
    %v550 = vpack.c.b16 %v392, %v390
    %v551 = vpack.c.b16 %v395, %v393
    %v552 = vpack.c.b16 %v396, %v394
    %v553 = vpack.c.b16 %v399, %v397
    %v554 = vpack.c.b16 %v400, %v398
    %v555 = vpack.c.b16 %v403, %v401
    %v556 = vpack.c.b16 %v404, %v402
    %v557 = vpack.c.b16 %v407, %v405
    %v558 = vpack.c.b16 %v408, %v406
    %v559 = vpack.c.b16 %v411, %v409
    %v560 = vpack.c.b16 %v412, %v410
    %v561 = vpack.c.b16 %v415, %v413
    %v562 = vpack.c.b16 %v416, %v414
    %v563 = vpack.c.b16 %v419, %v417
    %v564 = vpack.c.b16 %v420, %v418
    %v565 = vpack.c.b16 %v423, %v421
    %v566 = vpack.c.b16 %v424, %v422
    %v567 = vpack.c.b16 %v427, %v425
    %v568 = vpack.c.b16 %v428, %v426
    %v569 = vpack.c.b16 %v431, %v429
    %v570 = vpack.c.b16 %v432, %v430
    %v571 = vpack.c.b16 %v435, %v433
    %v572 = vpack.c.b16 %v436, %v434
    %v573 = vpack.c.b16 %v439, %v437
    %v574 = vpack.c.b16 %v440, %v438
    %v575 = vpack.c.b16 %v443, %v441
    %v576 = vpack.c.b16 %v444, %v442
    %v577 = vpack.c.b16 %v447, %v445
    %v578 = vpack.c.b16 %v448, %v446
    %v579 = vpack.c.b16 %v451, %v449
    %v580 = vpack.c.b16 %v452, %v450
    %v581 = vpack.c.b16 %v455, %v453
    %v582 = vpack.c.b16 %v456, %v454
    %v583 = vpack.c.b16 %v459, %v457
    %v584 = vpack.c.b16 %v460, %v458
    %v585 = vpack.c.b16 %v463, %v461
    %v586 = vpack.c.b16 %v464, %v462
    %v587 = vpack.c.b16 %v467, %v465
    %v588 = vpack.c.b16 %v468, %v466
    %v589 = vpack.c.b16 %v471, %v469
    %v590 = vpack.c.b16 %v472, %v470
    %v591 = vpack.c.b16 %v475, %v473
    %v592 = vpack.c.b16 %v476, %v474
    %v593 = vpack.c.b16 %v479, %v477
    %v594 = vpack.c.b16 %v480, %v478
    %v595 = vpack.c.b16 %v483, %v481
    %v596 = vpack.c.b16 %v484, %v482
    %v597 = vpack.c.b16 %v487, %v485
    %v598 = vpack.c.b16 %v488, %v486
    %v599 = vpack.c.b16 %v491, %v489
    %v600 = vpack.c.b16 %v492, %v490
    %v601 = vpack.c.b16 %v495, %v493
    %v602 = vpack.c.b16 %v496, %v494
    %v603 = vpack.c.b16 %v499, %v497
    %v604 = vpack.c.b16 %v500, %v498
    %v605 = vpack.c.b16 %v503, %v501
    %v606 = vpack.c.b16 %v504, %v502
    %v607 = vpack.c.b16 %v507, %v505
    %v608 = vpack.c.b16 %v508, %v506
    %v609 = vpack.c.b16 %v511, %v509
    %v610 = vpack.c.b16 %v512, %v510
    %v611 = vpack.c.b16 %v515, %v513
    %v612 = vpack.c.b16 %v516, %v514
    %709 = vmatprep.subr.bf16.mxu0 %v518
    %710 = vmatpush1.bf16.msra.mxu0 %v517
    %711 = vmatprep.subr.bf16.mxu0 %v520
    %712 = vmatpush1.bf16.msra.mxu0 %v519
    %713 = vmatprep.subr.bf16.mxu0 %v522
    %714 = vmatpush1.bf16.msra.mxu0 %v521
    %715 = vmatprep.subr.bf16.mxu0 %v524
    %716 = vmatpush1.bf16.msra.mxu0 %v523
    %717 = vmatprep.subr.bf16.mxu0 %v526
    %718 = vmatpush1.bf16.msra.mxu0 %v525
    %719 = vmatprep.subr.bf16.mxu0 %v528
    %720 = vmatpush1.bf16.msra.mxu0 %v527
    %721 = vmatprep.subr.bf16.mxu0 %v530
    %722 = vmatpush1.bf16.msra.mxu0 %v529
    %723 = vmatprep.subr.bf16.mxu0 %v532
    %724 = vmatpush1.bf16.msra.mxu0 %v531
    %725 = vmatprep.subr.bf16.mxu0 %v534
    %726 = vmatpush1.bf16.msra.mxu0 %v533
    %727 = vmatprep.subr.bf16.mxu0 %v536
    %728 = vmatpush1.bf16.msra.mxu0 %v535
    %729 = vmatprep.subr.bf16.mxu0 %v538
    %730 = vmatpush1.bf16.msra.mxu0 %v537
    %731 = vmatprep.subr.bf16.mxu0 %v540
    %732 = vmatpush1.bf16.msra.mxu0 %v539
    %733 = vmatprep.subr.bf16.mxu0 %v542
    %734 = vmatpush1.bf16.msra.mxu0 %v541
    %735 = vmatprep.subr.bf16.mxu0 %v544
    %736 = vmatpush1.bf16.msra.mxu0 %v543
    %737 = vmatprep.subr.bf16.mxu0 %v546
    %738 = vmatpush1.bf16.msra.mxu0 %v545
    %739 = vmatprep.subr.bf16.mxu0 %v548
    %740 = vmatpush1.bf16.msra.mxu0 %v547
    %741 = vmatprep.mubr.bf16.mxu0 %v116
    %742 = vmatmul.mubr.bf16.gmra.mrb[0].mxu0 %v115
    %v743 = vpop.f32.mrb[0].mxu0
    %v744 = vadd.f32 %v222, %v743
    %v745 = vpop.f32.mrb[0].mxu0
    %v746 = vadd.f32 %v226, %v745
    %v747 = vpop.f32.mrb[0].mxu0
    %v748 = vpop.f32.mrb[0].mxu0
    %749 = vdwg.mxu0
    %750 = vmatprep.subr.bf16.mxu0 %v550
    %751 = vmatpush1.bf16.msra.mxu0 %v549
    %752 = vmatprep.subr.bf16.mxu0 %v552
    %753 = vmatpush1.bf16.msra.mxu0 %v551
    %754 = vmatprep.subr.bf16.mxu0 %v554
    %755 = vmatpush1.bf16.msra.mxu0 %v553
    %756 = vmatprep.subr.bf16.mxu0 %v556
    %757 = vmatpush1.bf16.msra.mxu0 %v555
    %758 = vmatprep.subr.bf16.mxu0 %v558
    %759 = vmatpush1.bf16.msra.mxu0 %v557
    %760 = vmatprep.subr.bf16.mxu0 %v560
    %761 = vmatpush1.bf16.msra.mxu0 %v559
    %762 = vmatprep.subr.bf16.mxu0 %v562
    %763 = vmatpush1.bf16.msra.mxu0 %v561
    %764 = vmatprep.subr.bf16.mxu0 %v564
    %765 = vmatpush1.bf16.msra.mxu0 %v563
    %766 = vmatprep.subr.bf16.mxu0 %v566
    %767 = vmatpush1.bf16.msra.mxu0 %v565
    %768 = vmatprep.subr.bf16.mxu0 %v568
    %769 = vmatpush1.bf16.msra.mxu0 %v567
    %770 = vmatprep.subr.bf16.mxu0 %v570
    %771 = vmatpush1.bf16.msra.mxu0 %v569
    %772 = vmatprep.subr.bf16.mxu0 %v572
    %773 = vmatpush1.bf16.msra.mxu0 %v571
    %774 = vmatprep.subr.bf16.mxu0 %v574
    %775 = vmatpush1.bf16.msra.mxu0 %v573
    %776 = vmatprep.subr.bf16.mxu0 %v576
    %777 = vmatpush1.bf16.msra.mxu0 %v575
    %778 = vmatprep.subr.bf16.mxu0 %v578
    %779 = vmatpush1.bf16.msra.mxu0 %v577
    %780 = vmatprep.subr.bf16.mxu0 %v580
    %781 = vmatpush1.bf16.msra.mxu0 %v579
    %782 = vmatprep.mubr.bf16.mxu0 %v118
    %783 = vmatmul.mubr.bf16.gmra.mrb[0].mxu0 %v117
    %v784 = vpop.f32.mrb[0].mxu0
    %v785 = vadd.f32 %v744, %v784
    %v786 = vpop.f32.mrb[0].mxu0
    %v787 = vadd.f32 %v746, %v786
    %v788 = vpop.f32.mrb[0].mxu0
    %v789 = vpop.f32.mrb[0].mxu0
    %790 = vdwg.mxu0
    %791 = vmatprep.subr.bf16.mxu0 %v582
    %792 = vmatpush1.bf16.msra.mxu0 %v581
    %793 = vmatprep.subr.bf16.mxu0 %v584
    %794 = vmatpush1.bf16.msra.mxu0 %v583
    %795 = vmatprep.subr.bf16.mxu0 %v586
    %796 = vmatpush1.bf16.msra.mxu0 %v585
    %797 = vmatprep.subr.bf16.mxu0 %v588
    %798 = vmatpush1.bf16.msra.mxu0 %v587
    %799 = vmatprep.subr.bf16.mxu0 %v590
    %800 = vmatpush1.bf16.msra.mxu0 %v589
    %801 = vmatprep.subr.bf16.mxu0 %v592
    %802 = vmatpush1.bf16.msra.mxu0 %v591
    %803 = vmatprep.subr.bf16.mxu0 %v594
    %804 = vmatpush1.bf16.msra.mxu0 %v593
    %805 = vmatprep.subr.bf16.mxu0 %v596
    %806 = vmatpush1.bf16.msra.mxu0 %v595
    %807 = vmatprep.subr.bf16.mxu0 %v598
    %808 = vmatpush1.bf16.msra.mxu0 %v597
    %809 = vmatprep.subr.bf16.mxu0 %v600
    %810 = vmatpush1.bf16.msra.mxu0 %v599
    %811 = vmatprep.subr.bf16.mxu0 %v602
    %812 = vmatpush1.bf16.msra.mxu0 %v601
    %813 = vmatprep.subr.bf16.mxu0 %v604
    %814 = vmatpush1.bf16.msra.mxu0 %v603
    %815 = vmatprep.subr.bf16.mxu0 %v606
    %816 = vmatpush1.bf16.msra.mxu0 %v605
    %817 = vmatprep.subr.bf16.mxu0 %v608
    %818 = vmatpush1.bf16.msra.mxu0 %v607
    %819 = vmatprep.subr.bf16.mxu0 %v610
    %820 = vmatpush1.bf16.msra.mxu0 %v609
    %821 = vmatprep.subr.bf16.mxu0 %v612
    %822 = vmatpush1.bf16.msra.mxu0 %v611
    %823 = vmatprep.mubr.bf16.mxu0 %v120
    %824 = vmatmul.mubr.bf16.gmra.mrb[0].mxu0 %v119
    %v825 = vpop.f32.mrb[0].mxu0
    %v826 = vadd.f32 %v785, %v825
    %v827 = vpop.f32.mrb[0].mxu0
    %v828 = vadd.f32 %v787, %v827
    %v829 = vpop.f32.mrb[0].mxu0
    %v830 = vpop.f32.mrb[0].mxu0
    %831 = vdwg.mxu0
    %v832 = vmax.f32 %v826, 0.0
    %v833 = vmax.f32 %v828, 0.0
    %v834 = vpack.c.bf16 %v832, %v832
    %v835 = vpack.c.bf16 %v833, %v833
    %v836 = vld [vmem:[#allocation6] sm:$0xf]
    %v837 = vld [vmem:[#allocation6 + $0x4] sm:$0xf]
    %v838 = vld [vmem:[#allocation6 + $0x8] sm:$0xf]
    %v839 = vld [vmem:[#allocation6 + $0xc] sm:$0xf]
    %v840 = vld [vmem:[#allocation6 + $0x10] sm:$0xf]
    %v841 = vld [vmem:[#allocation6 + $0x14] sm:$0xf]
    %v842 = vld [vmem:[#allocation6 + $0x18] sm:$0xf]
    %v843 = vld [vmem:[#allocation6 + $0x1c] sm:$0xf]
    %v844 = vld [vmem:[#allocation6 + $0x20] sm:$0xf]
    %v845 = vld [vmem:[#allocation6 + $0x24] sm:$0xf]
    %v846 = vld [vmem:[#allocation6 + $0x28] sm:$0xf]
    %v847 = vld [vmem:[#allocation6 + $0x2c] sm:$0xf]
    %v848 = vld [vmem:[#allocation6 + $0x30] sm:$0xf]
    %v849 = vld [vmem:[#allocation6 + $0x34] sm:$0xf]
    %v850 = vld [vmem:[#allocation6 + $0x38] sm:$0xf]
    %v851 = vld [vmem:[#allocation6 + $0x3c] sm:$0xf]
    %v852 = vld [vmem:[#allocation6 + $0x40] sm:$0xf]
    %v853 = vld [vmem:[#allocation6 + $0x44] sm:$0xf]
    %v854 = vld [vmem:[#allocation6 + $0x48] sm:$0xf]
    %v855 = vld [vmem:[#allocation6 + $0x4c] sm:$0xf]
    %v856 = vld [vmem:[#allocation6 + $0x50] sm:$0xf]
    %v857 = vld [vmem:[#allocation6 + $0x54] sm:$0xf]
    %v858 = vld [vmem:[#allocation6 + $0x58] sm:$0xf]
    %v859 = vld [vmem:[#allocation6 + $0x5c] sm:$0xf]
    %v860 = vld [vmem:[#allocation6 + $0x60] sm:$0xf]
    %v861 = vld [vmem:[#allocation6 + $0x64] sm:$0xf]
    %v862 = vld [vmem:[#allocation6 + $0x68] sm:$0xf]
    %v863 = vld [vmem:[#allocation6 + $0x6c] sm:$0xf]
    %v864 = vld [vmem:[#allocation6 + $0x70] sm:$0xf]
    %v865 = vld [vmem:[#allocation6 + $0x74] sm:$0xf]
    %v866 = vld [vmem:[#allocation6 + $0x78] sm:$0xf]
    %v867 = vld [vmem:[#allocation6 + $0x7c] sm:$0xf]
    %v868 = vld [vmem:[%s4] sm:$0x1]
    %v870 = vlaneseq
    %v871 = vshrl.u32 %v870, 7
    %v872 = vsub.s32 0, %v871
    %v873 = vrot.slane %v868, %v872
    %v907 = vunpack.c.l.b16 %v836
    %v908 = vunpack.c.l.b16 %v837
    %v909 = vunpack.c.l.b16 %v838
    %v910 = vunpack.c.l.b16 %v839
    %v911 = vunpack.c.l.b16 %v840
    %v912 = vunpack.c.l.b16 %v841
    %v913 = vunpack.c.l.b16 %v842
    %v914 = vunpack.c.l.b16 %v843
    %v915 = vunpack.c.l.b16 %v844
    %v916 = vunpack.c.l.b16 %v845
    %v917 = vunpack.c.l.b16 %v846
    %v918 = vunpack.c.l.b16 %v847
    %v919 = vunpack.c.l.b16 %v848
    %v920 = vunpack.c.l.b16 %v849
    %v921 = vunpack.c.l.b16 %v850
    %v922 = vunpack.c.l.b16 %v851
    %v923 = vunpack.c.l.b16 %v852
    %v924 = vunpack.c.l.b16 %v853
    %v925 = vunpack.c.l.b16 %v854
    %v926 = vunpack.c.l.b16 %v855
    %v927 = vunpack.c.l.b16 %v856
    %v928 = vunpack.c.l.b16 %v857
    %v929 = vunpack.c.l.b16 %v858
    %v930 = vunpack.c.l.b16 %v859
    %v931 = vunpack.c.l.b16 %v860
    %v932 = vunpack.c.l.b16 %v861
    %v933 = vunpack.c.l.b16 %v862
    %v934 = vunpack.c.l.b16 %v863
    %v935 = vunpack.c.l.b16 %v864
    %v936 = vunpack.c.l.b16 %v865
    %v937 = vunpack.c.l.b16 %v866
    %v938 = vunpack.c.l.b16 %v867
    %v939 = vpack.c.b16 %v908, %v907
    %v940 = vpack.c.b16 %v910, %v909
    %v941 = vpack.c.b16 %v912, %v911
    %v942 = vpack.c.b16 %v914, %v913
    %v943 = vpack.c.b16 %v916, %v915
    %v944 = vpack.c.b16 %v918, %v917
    %v945 = vpack.c.b16 %v920, %v919
    %v946 = vpack.c.b16 %v922, %v921
    %v947 = vpack.c.b16 %v924, %v923
    %v948 = vpack.c.b16 %v926, %v925
    %v949 = vpack.c.b16 %v928, %v927
    %v950 = vpack.c.b16 %v930, %v929
    %v951 = vpack.c.b16 %v932, %v931
    %v952 = vpack.c.b16 %v934, %v933
    %v953 = vpack.c.b16 %v936, %v935
    %v954 = vpack.c.b16 %v938, %v937
    %971 = vmatprep.subr.bf16.mxu0 0
    %972 = vmatpush1.bf16.msra.mxu0 %v939
    %973 = vmatprep.subr.bf16.mxu0 0
    %974 = vmatpush1.bf16.msra.mxu0 %v940
    %975 = vmatprep.subr.bf16.mxu0 0
    %976 = vmatpush1.bf16.msra.mxu0 %v941
    %977 = vmatprep.subr.bf16.mxu0 0
    %978 = vmatpush1.bf16.msra.mxu0 %v942
    %979 = vmatprep.subr.bf16.mxu0 0
    %980 = vmatpush1.bf16.msra.mxu0 %v943
    %981 = vmatprep.subr.bf16.mxu0 0
    %982 = vmatpush1.bf16.msra.mxu0 %v944
    %983 = vmatprep.subr.bf16.mxu0 0
    %984 = vmatpush1.bf16.msra.mxu0 %v945
    %985 = vmatprep.subr.bf16.mxu0 0
    %986 = vmatpush1.bf16.msra.mxu0 %v946
    %987 = vmatprep.subr.bf16.mxu0 0
    %988 = vmatpush1.bf16.msra.mxu0 %v947
    %989 = vmatprep.subr.bf16.mxu0 0
    %990 = vmatpush1.bf16.msra.mxu0 %v948
    %991 = vmatprep.subr.bf16.mxu0 0
    %992 = vmatpush1.bf16.msra.mxu0 %v949
    %993 = vmatprep.subr.bf16.mxu0 0
    %994 = vmatpush1.bf16.msra.mxu0 %v950
    %995 = vmatprep.subr.bf16.mxu0 0
    %996 = vmatpush1.bf16.msra.mxu0 %v951
    %997 = vmatprep.subr.bf16.mxu0 0
    %998 = vmatpush1.bf16.msra.mxu0 %v952
    %999 = vmatprep.subr.bf16.mxu0 0
    %1000 = vmatpush1.bf16.msra.mxu0 %v953
    %1001 = vmatprep.subr.bf16.mxu0 0
    %1002 = vmatpush1.bf16.msra.mxu0 %v954
    %1003 = vmatprep.mubr.bf16.mxu0 %v835
    %1004 = vmatmul.mubr.bf16.gmra.mrb[0].mxu0 %v834
    %v1005 = vpop.f32.mrb[0].mxu0
    %v1006 = vadd.f32 %v873, %v1005
    %v1007 = vpop.f32.mrb[0].mxu0
    %v1008 = vpop.f32.mrb[0].mxu0
    %v1009 = vpop.f32.mrb[0].mxu0
    %1010 = vdwg.mxu0
    %v1011 = vmax.f32 %v1006, 0.0
    %v1012 = vpack.c.bf16 %v1011, %v1011
    %v1013 = vld [vmem:[#allocation7] sm:$0xf]
    %v1014 = vld [vmem:[#allocation7 + $0x4] sm:$0xf]
    %v1015 = vld [vmem:[#allocation7 + $0x8] sm:$0xf]
    %v1016 = vld [vmem:[#allocation7 + $0xc] sm:$0xf]
    %v1017 = vld [vmem:[#allocation7 + $0x10] sm:$0xf]
    %v1018 = vld [vmem:[#allocation7 + $0x14] sm:$0xf]
    %v1019 = vld [vmem:[#allocation7 + $0x18] sm:$0xf]
    %v1020 = vld [vmem:[#allocation7 + $0x1c] sm:$0xf]
    %v1021 = vld [vmem:[#allocation7 + $0x20] sm:$0xf]
    %v1022 = vld [vmem:[#allocation7 + $0x24] sm:$0xf]
    %v1023 = vld [vmem:[#allocation7 + $0x28] sm:$0xf]
    %v1024 = vld [vmem:[#allocation7 + $0x2c] sm:$0xf]
    %v1025 = vld [vmem:[#allocation7 + $0x30] sm:$0xf]
    %v1026 = vld [vmem:[#allocation7 + $0x34] sm:$0xf]
    %v1027 = vld [vmem:[#allocation7 + $0x38] sm:$0xf]
    %v1028 = vld [vmem:[#allocation7 + $0x3c] sm:$0xf]
    %v1029 = vld [vmem:[%s6] sm:$0x1]
    %v1031 = vlaneseq
    %v1032 = vshrl.u32 %v1031, 7
    %v1033 = vsub.s32 0, %v1032
    %v1034 = vrot.slane %v1029, %v1033
    %v1052 = vunpack.c.l.b16 %v1013
    %v1053 = vunpack.c.l.b16 %v1014
    %v1054 = vunpack.c.l.b16 %v1015
    %v1055 = vunpack.c.l.b16 %v1016
    %v1056 = vunpack.c.l.b16 %v1017
    %v1057 = vunpack.c.l.b16 %v1018
    %v1058 = vunpack.c.l.b16 %v1019
    %v1059 = vunpack.c.l.b16 %v1020
    %v1060 = vunpack.c.l.b16 %v1021
    %v1061 = vunpack.c.l.b16 %v1022
    %v1062 = vunpack.c.l.b16 %v1023
    %v1063 = vunpack.c.l.b16 %v1024
    %v1064 = vunpack.c.l.b16 %v1025
    %v1065 = vunpack.c.l.b16 %v1026
    %v1066 = vunpack.c.l.b16 %v1027
    %v1067 = vunpack.c.l.b16 %v1028
    %v1068 = vpack.c.b16 %v1053, %v1052
    %v1069 = vpack.c.b16 %v1055, %v1054
    %v1070 = vpack.c.b16 %v1057, %v1056
    %v1071 = vpack.c.b16 %v1059, %v1058
    %v1072 = vpack.c.b16 %v1061, %v1060
    %v1073 = vpack.c.b16 %v1063, %v1062
    %v1074 = vpack.c.b16 %v1065, %v1064
    %v1075 = vpack.c.b16 %v1067, %v1066
    %1084 = vmatprep.subr.bf16.mxu0 0
    %1085 = vmatpush1.bf16.msra.mxu0 %v1068
    %1086 = vmatprep.subr.bf16.mxu0 0
    %1087 = vmatpush1.bf16.msra.mxu0 %v1069
    %1088 = vmatprep.subr.bf16.mxu0 0
    %1089 = vmatpush1.bf16.msra.mxu0 %v1070
    %1090 = vmatprep.subr.bf16.mxu0 0
    %1091 = vmatpush1.bf16.msra.mxu0 %v1071
    %1092 = vmatprep.subr.bf16.mxu0 0
    %1093 = vmatpush1.bf16.msra.mxu0 %v1072
    %1094 = vmatprep.subr.bf16.mxu0 0
    %1095 = vmatpush1.bf16.msra.mxu0 %v1073
    %1096 = vmatprep.subr.bf16.mxu0 0
    %1097 = vmatpush1.bf16.msra.mxu0 %v1074
    %1098 = vmatprep.subr.bf16.mxu0 0
    %1099 = vmatpush1.bf16.msra.mxu0 %v1075
    %1100 = vmatprep.subr.bf16.mxu0 0
    %1101 = vmatpush1.bf16.msra.mxu0 0
    %1102 = vmatprep.subr.bf16.mxu0 0
    %1103 = vmatpush1.bf16.msra.mxu0 0
    %1104 = vmatprep.subr.bf16.mxu0 0
    %1105 = vmatpush1.bf16.msra.mxu0 0
    %1106 = vmatprep.subr.bf16.mxu0 0
    %1107 = vmatpush1.bf16.msra.mxu0 0
    %1108 = vmatprep.subr.bf16.mxu0 0
    %1109 = vmatpush1.bf16.msra.mxu0 0
    %1110 = vmatprep.subr.bf16.mxu0 0
    %1111 = vmatpush1.bf16.msra.mxu0 0
    %1112 = vmatprep.subr.bf16.mxu0 0
    %1113 = vmatpush1.bf16.msra.mxu0 0
    %1114 = vmatprep.subr.bf16.mxu0 0
    %1115 = vmatpush1.bf16.msra.mxu0 0
    %1116 = vmatprep.mubr.bf16.mxu0 0
    %1117 = vmatmul.mubr.bf16.gmra.mrb[0].mxu0 %v1012
    %v1118 = vpop.f32.mrb[0].mxu0
    %v1119 = vadd.f32 %v1034, %v1118
    %v1120 = vpop.f32.mrb[0].mxu0
    %v1121 = vpop.f32.mrb[0].mxu0
    %v1122 = vpop.f32.mrb[0].mxu0
    %1123 = vdwg.mxu0
    %v1124 = vpack.c.bf16 %v1119, %v1119
    %1125 = vst [vmem:[%s7] sm:$0x1] %v1124
    // Predicated region
    $region46: #{deep_nn_forward.1} parent=1 // pred_check
      _
    $region47: #{deep_nn_forward.1} parent=1 // pred_check_branch
      %1127 = sbr.rel (0) target = $region49
    $region48: #{deep_nn_forward.1} parent=1 // pred_region
      _
    $region49: #{deep_nn_forward.1} parent=1 // pred_fallthru
      _
    // Predicated region
    $region50: #{deep_nn_forward.1} parent=1 // pred_check
      _
    $region51: #{deep_nn_forward.1} parent=1 // pred_check_branch
      %1129 = sbr.rel (0) target = $region53
    $region52: #{deep_nn_forward.1} parent=1 // pred_region
      _
    $region53: #{deep_nn_forward.1} parent=1 // pred_fallthru
      _
    %1130 = vsyncpa [#allocation3], 1
    %1131 = vsyncpa [#allocation5], 1
    %1132 = vsyncpa [#allocation8], 1

</llo_original>
